<compile_context>
chip_gen: v6e
topology: v6e:2x2x1
jax: 0.10.0
libtpu: 0.0.40
codegen_flags: <defaults>
</compile_context>

<pallas_src>
import functools

import jax
import jax.numpy as jnp
from jax.experimental import pallas as pl
from jax.experimental.pallas import tpu as pltpu

MARGIN = 2.0
EPS = 1e-6  # F.pairwise_distance default


def _contrastive_kernel(x1_ref, x2_ref, lab_ref, o_ref, *, n_valid, tile_b,
                        margin, eps):
    """Per-row contrastive loss for one (TILE_B, D) batch tile.

    x1_ref, x2_ref: (TILE_B, D) f32 embeddings (D on the lane axis).
    lab_ref:        (TILE_B, 1) f32 labels (0 = similar pair, 1 = dissimilar).
    o_ref:          (TILE_B, 1) f32 per-row loss (padded rows written as 0).
    """
    diff = (x1_ref[...] - x2_ref[...]) + eps                    # VPU
    d2 = jnp.sum(diff * diff, axis=-1, keepdims=True)           # lane reduce (XLU)
    d = jnp.sqrt(d2)                                            # (TILE_B, 1)
    lab = lab_ref[...]
    hinge = jnp.maximum(margin - d, 0.0)
    per_row = (1.0 - lab) * (d * d) + lab * (hinge * hinge)     # (TILE_B, 1)

    # Mask batch-padding rows (only emitted when padding actually exists:
    # n_valid / tile_b are Python ints, so this branch is resolved at trace time).
    if n_valid % tile_b != 0:
        i = pl.program_id(0)
        rows = i * tile_b + jax.lax.broadcasted_iota(jnp.int32, (tile_b, 1), 0)
        per_row = jnp.where(rows < n_valid, per_row, 0.0)

    o_ref[...] = per_row


def contrastive_loss(output1, output2, label, margin=MARGIN, *, tile_b=None):
    """Pallas implementation of ContrastiveLoss.forward(output1, output2, label)."""
    B, D = output1.shape
    if tile_b is None:
        tile_b = min(256, -(-B // 8) * 8)      # multiple of 8 sublanes, VMEM-friendly
    b_pad = -(-B // tile_b) * tile_b
    pad = b_pad - B

    x1 = jnp.pad(output1.astype(jnp.float32), ((0, pad), (0, 0)))
    x2 = jnp.pad(output2.astype(jnp.float32), ((0, pad), (0, 0)))
    lab = jnp.pad(label.astype(jnp.float32).reshape(B, 1), ((0, pad), (0, 0)))

    grid = (b_pad // tile_b,)
    kernel = functools.partial(_contrastive_kernel, n_valid=B, tile_b=tile_b,
                               margin=float(margin), eps=EPS)

    per_row = pl.pallas_call(
        kernel,
        out_shape=jax.ShapeDtypeStruct((b_pad, 1), jnp.float32),
        grid_spec=pltpu.PrefetchScalarGridSpec(
            num_scalar_prefetch=0,
            grid=grid,
            in_specs=[
                pl.BlockSpec((tile_b, D), lambda i: (i, 0)),
                pl.BlockSpec((tile_b, D), lambda i: (i, 0)),
                pl.BlockSpec((tile_b, 1), lambda i: (i, 0)),
            ],
            out_specs=pl.BlockSpec((tile_b, 1), lambda i: (i, 0)),
        ),
        compiler_params=pltpu.CompilerParams(
            dimension_semantics=("parallel",),
        ),
    )(x1, x2, lab)

    # Final mean over B scalars (padded rows are already zero) — trivial XLA glue.
    return jnp.sum(per_row) / B


def contrastive_loss_ref(output1, output2, label, margin=MARGIN):
    """Pure-JAX reference mirroring the PyTorch module."""
    d = jnp.sqrt(jnp.sum((output1 - output2 + EPS) ** 2, axis=1))
    return jnp.mean((1.0 - label) * d ** 2
                    + label * jnp.maximum(margin - d, 0.0) ** 2)


if __name__ == "__main__":
    key = jax.random.PRNGKey(0)
    k1, k2, k3 = jax.random.split(key, 3)

    # Small shapes implied by the module: a batch of embedding pairs + 0/1 labels.
    B, D = 16, 128
    output1 = jax.random.normal(k1, (B, D), jnp.float32)
    output2 = jax.random.normal(k2, (B, D), jnp.float32)
    label = jax.random.bernoulli(k3, 0.5, (B,)).astype(jnp.float32)

    loss_fn = jax.jit(functools.partial(contrastive_loss, tile_b=8))  # grid of 2 tiles
    loss = loss_fn(output1, output2, label)
    jax.block_until_ready(loss)

    ref = contrastive_loss_ref(output1, output2, label)
    assert loss.shape == ()
    assert jnp.allclose(loss, ref, rtol=1e-5, atol=1e-5), (float(loss), float(ref))
    print("KERNEL_OK")
</pallas_src>

<mosaic_0001>
module attributes {stable_mosaic.version = 11 : i64} {
  func.func @_contrastive_kernel(%arg0: i32, %arg1: memref<8x128xf32, #tpu.memory_space<vmem>>, %arg2: memref<8x128xf32, #tpu.memory_space<vmem>>, %arg3: memref<8x1xf32, #tpu.memory_space<vmem>>, %arg4: memref<8x1xf32, #tpu.memory_space<vmem>>) attributes {dimension_semantics = [#tpu.dimension_semantics<parallel>], iteration_bounds = array<i64: 2>, scalar_prefetch = 0 : i64, scratch_operands = 0 : i64, tpu.core_type = #tpu.core_type<tc>, window_params = [{transform_indices = @transform_0, window_bounds = array<i64: 8, 128>}, {transform_indices = @transform_1, window_bounds = array<i64: 8, 128>}, {transform_indices = @transform_2, window_bounds = array<i64: 8, 1>}, {transform_indices = @transform_3, window_bounds = array<i64: 8, 1>}]} {
    %c0 = arith.constant 0 : index
    %c0_0 = arith.constant 0 : index
    %0 = vector.load %arg1[%c0, %c0_0] : memref<8x128xf32, #tpu.memory_space<vmem>>, vector<8x128xf32>
    %c0_1 = arith.constant 0 : index
    %c0_2 = arith.constant 0 : index
    %1 = vector.load %arg2[%c0_1, %c0_2] : memref<8x128xf32, #tpu.memory_space<vmem>>, vector<8x128xf32>
    %2 = arith.subf %0, %1 : vector<8x128xf32>
    %cst = arith.constant 9.99999997E-7 : f32
    %3 = vector.broadcast %cst : f32 to vector<8x128xf32>
    %4 = arith.addf %2, %3 : vector<8x128xf32>
    %5 = arith.mulf %4, %4 : vector<8x128xf32>
    %cst_3 = arith.constant dense<0.000000e+00> : vector<8xf32>
    %6 = vector.multi_reduction <add>, %5, %cst_3 [1] : vector<8x128xf32> to vector<8xf32>
    %7 = vector.shape_cast %6 : vector<8xf32> to vector<8x1xf32>
    %8 = math.sqrt %7 : vector<8x1xf32>
    %c0_4 = arith.constant 0 : index
    %c0_5 = arith.constant 0 : index
    %9 = vector.load %arg3[%c0_4, %c0_5] : memref<8x1xf32, #tpu.memory_space<vmem>>, vector<8x1xf32>
    %cst_6 = arith.constant 2.000000e+00 : f32
    %10 = vector.broadcast %cst_6 : f32 to vector<8x1xf32>
    %11 = arith.subf %10, %8 : vector<8x1xf32>
    %cst_7 = arith.constant 0.000000e+00 : f32
    %12 = vector.broadcast %cst_7 : f32 to vector<8x1xf32>
    %13 = arith.maximumf %11, %12 : vector<8x1xf32>
    %cst_8 = arith.constant 1.000000e+00 : f32
    %14 = vector.broadcast %cst_8 : f32 to vector<8x1xf32>
    %15 = arith.subf %14, %9 : vector<8x1xf32>
    %16 = arith.mulf %8, %8 : vector<8x1xf32>
    %17 = arith.mulf %15, %16 : vector<8x1xf32>
    %18 = arith.mulf %13, %13 : vector<8x1xf32>
    %19 = arith.mulf %9, %18 : vector<8x1xf32>
    %20 = arith.addf %17, %19 : vector<8x1xf32>
    %c0_9 = arith.constant 0 : index
    %c0_10 = arith.constant 0 : index
    %21 = vector.load %arg4[%c0_9, %c0_10] : memref<8x1xf32, #tpu.memory_space<vmem>>, vector<8x1xf32>
    tpu.vector_store %arg4[%c0_9, %c0_10], %20 {strides = array<i32>} : memref<8x1xf32, #tpu.memory_space<vmem>>, vector<8x1xf32>,
    return
  }
  func.func @transform_0(%arg0: i32) -> (i32, i32) {
    %c0_i32 = arith.constant 0 : i32
    %c0_i32_0 = arith.constant 0 : i32
    return %arg0, %c0_i32 : i32, i32
  }
  func.func @transform_1(%arg0: i32) -> (i32, i32) {
    %c0_i32 = arith.constant 0 : i32
    %c0_i32_0 = arith.constant 0 : i32
    return %arg0, %c0_i32 : i32, i32
  }
  func.func @transform_2(%arg0: i32) -> (i32, i32) {
    %c0_i32 = arith.constant 0 : i32
    %c0_i32_0 = arith.constant 0 : i32
    return %arg0, %c0_i32 : i32, i32
  }
  func.func @transform_3(%arg0: i32) -> (i32, i32) {
    %c0_i32 = arith.constant 0 : i32
    %c0_i32_0 = arith.constant 0 : i32
    return %arg0, %c0_i32 : i32, i32
  }
}

</mosaic_0001>

<llo_original>
// kernel: contrastive_loss.1
$region0: #{contrastive_loss.1}
  #allocation0 [shape = 'u32[]', space=smem, size = 0x4, offset = 0x4, fixed_abs, tag = 'smem constant byte address 0x4 - core index']
  #allocation1 [shape = 'u32[144,128]{1,0:T(1,128)}', space=vmem, size = 0x12000, scoped, tag = 'internal scratch']
  %s0 = inlined_call_operand.vmem [shape: f32[16,128], index: 0, kind: input, shape index: {}]
  %s1 = inlined_call_operand.hbm [shape: f32[16,128], index: 1, kind: input, shape index: {}]
  %s2 = inlined_call_operand.vmem [shape: f32[16,1], index: 2, kind: input, shape index: {}]
  %s3 = inlined_call_operand.vmem [shape: f32[16,1], index: 3, kind: output, shape index: {}]
  %s4 = sld [smem:[#allocation0]]
  $region49: #{contrastive_loss.1} parent=0
    _
  %s6 = ssub.s32 1, %s4
  %s7 = scalar_select 0, %s6, %s4
  $region1: #{contrastive_loss.1} parent=0
    #allocation2 [shape = 'u8[8192]{0}', space=vmem, size = 0x2000, scoped, tag = 'input window, operand 1']
    #allocation3 [shape = 's32[2]{0}', space=sflag, size = 0x8, scoped, tag = 'scoped memory for contrastive_loss.1']
    %8 = vsyncpa [#allocation3], 0
    %s9 = scalar_lea.sflag [#allocation3], 1
    %10 = vsyncpa %s9, 0
    loop: start=0, step=1, limit=4
    $region2: #{contrastive_loss.1} parent=1 // loop_pre_header
      _
    $region3: #{contrastive_loss.1} parent=1 // loop_header
      %s12 = sphi 0, %s16
      %p13 = scmp.ge.s32.totalorder %s12, 4
      %s22 = sphi 0, %s24
      %s25 = sphi 0, %s22
      %s26 = sphi 0, %s25
      %s42 = sphi 0, %s26
      %s48 = sphi 0, %s50
      %s51 = sphi 0, %s48
      %s52 = sphi 0, %s51
      %s68 = sphi 0, %s52
      %s74 = sphi 0, %s76
      %s77 = sphi 0, %s74
      %s78 = sphi 0, %s77
      %s94 = sphi 0, %s78
      %s100 = sphi 0, %s102
      %s103 = sphi 0, %s100
      %s104 = sphi 0, %s103
      %s120 = sphi 0, %s104
    $region4: #{contrastive_loss.1} parent=1 // loop_header_branch
      %15 = sbr.rel (%p13) target = $region8
    $region5: #{contrastive_loss.1} parent=1 // loop_body
      %s17 = ssub.s32 %s12, 1
      %s18 = ssub.s32 %s12, 2
      %s19 = sadd.s32 %s12, 1
      %s20 = ssub.s32 %s12, %s19
      %p21 = scmp.eq.s32.totalorder %s20, 0
      %s23 = sadd.s32 %s22, 1
      %s24 = scalar_select %p21, %s22, %s23
      %p27 = pneg %p21
      %p28 = scmp.eq.s32.totalorder %s12, 1
      %p29 = por %p27, %p28
      %p30 = scmp.ne.s32.totalorder %s22, %s25
      %p31 = scmp.eq.s32.totalorder %s12, 0
      %p32 = por %p30, %p31
      %p33 = scmp.ne.s32.totalorder %s22, %s25
      %p34 = scmp.eq.s32.totalorder %s17, 1
      %p35 = por %p33, %p34
      %p36 = scmp.ne.s32.totalorder %s25, %s26
      %p37 = scmp.eq.s32.totalorder %s17, 0
      %p38 = por %p36, %p37
      %p39 = scmp.ne.s32.totalorder %s25, %s26
      %p40 = scmp.eq.s32.totalorder %s18, 1
      %p41 = por %p39, %p40
      %p43 = scmp.ne.s32.totalorder %s26, %s42
      %p44 = scmp.eq.s32.totalorder %s18, 0
      %p45 = por %p43, %p44
      %s46 = ssub.s32 %s12, %s19
      %p47 = scmp.eq.s32.totalorder %s46, 0
      %s49 = sadd.s32 %s48, 1
      %s50 = scalar_select %p47, %s48, %s49
      %p53 = pneg %p47
      %p54 = scmp.eq.s32.totalorder %s12, 1
      %p55 = por %p53, %p54
      %p56 = scmp.ne.s32.totalorder %s48, %s51
      %p57 = scmp.eq.s32.totalorder %s12, 0
      %p58 = por %p56, %p57
      %p59 = scmp.ne.s32.totalorder %s48, %s51
      %p60 = scmp.eq.s32.totalorder %s17, 1
      %p61 = por %p59, %p60
      %p62 = scmp.ne.s32.totalorder %s51, %s52
      %p63 = scmp.eq.s32.totalorder %s17, 0
      %p64 = por %p62, %p63
      %p65 = scmp.ne.s32.totalorder %s51, %s52
      %p66 = scmp.eq.s32.totalorder %s18, 1
      %p67 = por %p65, %p66
      %p69 = scmp.ne.s32.totalorder %s52, %s68
      %p70 = scmp.eq.s32.totalorder %s18, 0
      %p71 = por %p69, %p70
      %s72 = ssub.s32 %s12, %s19
      %p73 = scmp.eq.s32.totalorder %s72, 0
      %s75 = sadd.s32 %s74, 1
      %s76 = scalar_select %p73, %s74, %s75
      %p79 = pneg %p73
      %p80 = scmp.eq.s32.totalorder %s12, 1
      %p81 = por %p79, %p80
      %p82 = scmp.ne.s32.totalorder %s74, %s77
      %p83 = scmp.eq.s32.totalorder %s12, 0
      %p84 = por %p82, %p83
      %p85 = scmp.ne.s32.totalorder %s74, %s77
      %p86 = scmp.eq.s32.totalorder %s17, 1
      %p87 = por %p85, %p86
      %p88 = scmp.ne.s32.totalorder %s77, %s78
      %p89 = scmp.eq.s32.totalorder %s17, 0
      %p90 = por %p88, %p89
      %p91 = scmp.ne.s32.totalorder %s77, %s78
      %p92 = scmp.eq.s32.totalorder %s18, 1
      %p93 = por %p91, %p92
      %p95 = scmp.ne.s32.totalorder %s78, %s94
      %p96 = scmp.eq.s32.totalorder %s18, 0
      %p97 = por %p95, %p96
      %s98 = ssub.s32 %s12, %s19
      %p99 = scmp.eq.s32.totalorder %s98, 0
      %s101 = sadd.s32 %s100, 1
      %s102 = scalar_select %p99, %s100, %s101
      %p105 = pneg %p99
      %p106 = scmp.eq.s32.totalorder %s12, 1
      %p107 = por %p105, %p106
      %p108 = scmp.ne.s32.totalorder %s100, %s103
      %p109 = scmp.eq.s32.totalorder %s12, 0
      %p110 = por %p108, %p109
      %p111 = scmp.ne.s32.totalorder %s100, %s103
      %p112 = scmp.eq.s32.totalorder %s17, 1
      %p113 = por %p111, %p112
      %p114 = scmp.ne.s32.totalorder %s103, %s104
      %p115 = scmp.eq.s32.totalorder %s17, 0
      %p116 = por %p114, %p115
      %p117 = scmp.ne.s32.totalorder %s103, %s104
      %p118 = scmp.eq.s32.totalorder %s18, 1
      %p119 = por %p117, %p118
      %p121 = scmp.ne.s32.totalorder %s104, %s120
      %p122 = scmp.eq.s32.totalorder %s18, 0
      %p123 = por %p121, %p122
      %p124 = scmp.le.s32.totalorder 1, %s12
      %p125 = scmp.lt.s32.totalorder %s12, 3
      %p126 = pnand %p124, %p125
      %p127 = pneg %p126
      // Predicated region
      $region9: #{contrastive_loss.1} parent=5 // pred_check
        _
      $region10: #{contrastive_loss.1} parent=5 // pred_check_branch
        %129 = sbr.rel (%p126) target = $region12
      $region11: #{contrastive_loss.1} parent=5 // pred_region
        %s130 = ssub.s32 %s12, 1
      $region12: #{contrastive_loss.1} parent=5 // pred_fallthru
        _
      %p131 = scmp.lt.s32.totalorder %s12, 2
      // Predicated region
      $region13: #{contrastive_loss.1} parent=5 // pred_check
        %p132 = pneg %p131
      $region14: #{contrastive_loss.1} parent=5 // pred_check_branch
        %134 = sbr.rel (%p132) target = $region16
      $region15: #{contrastive_loss.1} parent=5 // pred_region
        // Predicated region
        $region17: #{contrastive_loss.1} parent=15 // pred_check
          %p135 = pneg %p32
        $region18: #{contrastive_loss.1} parent=15 // pred_check_branch
          %137 = sbr.rel (%p135) target = $region20
        $region19: #{contrastive_loss.1} parent=15 // pred_region
          %p138 = scmp.lt.s32.totalorder %s12, 1
          %s139 = scalar_select %p138, %s12, 1
          %s140 = smul.addr %s139, 8
          %s141 = scalar_lea.vmem %s0, %s140
        $region20: #{contrastive_loss.1} parent=15 // pred_fallthru
          _
        // Predicated region
        $region21: #{contrastive_loss.1} parent=15 // pred_check
          %p142 = pneg %p58
        $region22: #{contrastive_loss.1} parent=15 // pred_check_branch
          %144 = sbr.rel (%p142) target = $region24
        $region23: #{contrastive_loss.1} parent=15 // pred_region
          %s145 = sand.u32 %s48, 1
          %s146 = scalar_lea.sflag [#allocation3], %s145
          %s147 = sand.u32 %s48, 1
          %s148 = smul.addr %s147, 8
          %s149 = scalar_lea.vmem [#allocation2], %s148
          %s151 = ssub.s32 128, 128
          %152 = vsyncadd %s146, %s151
          %s153 = smul.addr %s12, 128
          %s154 = scalar_lea.hbm %s1, %s153
          %s156 = sshll.u32 %s149, 4
          %s157 = int_to_ptr.vmem [resolvable:$true] %s156
          %159 = dma.hbm_to_vmem [thread:$0]  %s154, 128, %s157, %s146
        $region24: #{contrastive_loss.1} parent=15 // pred_fallthru
          _
        // Predicated region
        $region25: #{contrastive_loss.1} parent=15 // pred_check
          %p160 = pneg %p84
        $region26: #{contrastive_loss.1} parent=15 // pred_check_branch
          %162 = sbr.rel (%p160) target = $region28
        $region27: #{contrastive_loss.1} parent=15 // pred_region
          %p163 = scmp.lt.s32.totalorder %s12, 1
          %s164 = scalar_select %p163, %s12, 1
          %s165 = smul.addr %s164, 8
          %s166 = scalar_lea.vmem %s2, %s165
        $region28: #{contrastive_loss.1} parent=15 // pred_fallthru
          _
      $region16: #{contrastive_loss.1} parent=5 // pred_fallthru
        _
      %p167 = scmp.le.s32.totalorder 1, %s12
      %p168 = scmp.lt.s32.totalorder %s12, 3
      %p169 = pnand %p167, %p168
      %p170 = pneg %p169
      // Predicated region
      $region29: #{contrastive_loss.1} parent=5 // pred_check
        _
      $region30: #{contrastive_loss.1} parent=5 // pred_check_branch
        %172 = sbr.rel (%p169) target = $region32
      $region31: #{contrastive_loss.1} parent=5 // pred_region
        %s173 = ssub.s32 %s12, 1
        %s174 = sand.u32 %s51, 1
        %s175 = scalar_lea.sflag [#allocation3], %s174
        %s176 = sand.u32 %s51, 1
        %s177 = smul.addr %s176, 8
        %s178 = scalar_lea.vmem [#allocation2], %s177
        // Predicated region
        $region33: #{contrastive_loss.1} parent=31 // pred_check
          %p179 = pneg %p64
        $region34: #{contrastive_loss.1} parent=31 // pred_check_branch
          %181 = sbr.rel (%p179) target = $region36
        $region35: #{contrastive_loss.1} parent=31 // pred_region
          %182 = dma.done %s175, 128
        $region36: #{contrastive_loss.1} parent=31 // pred_fallthru
          _
        %p183 = scmp.lt.s32.totalorder %s17, 1
        %s184 = scalar_select %p183, %s17, 1
        %s185 = smul.addr %s184, 8
        %s186 = scalar_lea.vmem %s0, %s185
        %p187 = pneg %p38
        %p188 = pneg %p35
        %s189 = sand.u32 %s51, 1
        %s190 = scalar_lea.sflag [#allocation3], %s189
        %s191 = sand.u32 %s51, 1
        %s192 = smul.addr %s191, 8
        %s193 = scalar_lea.vmem [#allocation2], %s192
        %p194 = pneg %p64
        %p195 = pneg %p61
        %p196 = scmp.lt.s32.totalorder %s17, 1
        %s197 = scalar_select %p196, %s17, 1
        %s198 = smul.addr %s197, 8
        %s199 = scalar_lea.vmem %s2, %s198
        %p200 = pneg %p90
        %p201 = pneg %p87
        %p202 = pneg %p116
        %p203 = pneg %p113
        %p204 = scmp.lt.s32.totalorder %s17, 1
        %s205 = scalar_select %p204, %s17, 1
        %s206 = smul.addr %s205, 8
        %s207 = scalar_lea.vmem %s3, %s206
        %p208 = scmp.lt.s32.totalorder %s17, 1
        %s209 = scalar_select %p208, %s17, 1
        %s210 = smul.addr %s209, 8
        %s211 = scalar_lea.vmem %s0, %s210
        %p212 = scmp.lt.s32.totalorder %s17, 1
        %s213 = scalar_select %p212, %s17, 1
        %s214 = smul.addr %s213, 8
        %s215 = scalar_lea.vmem %s2, %s214
        %p216 = scmp.lt.s32.totalorder %s17, 1
        %s217 = scalar_select %p216, %s17, 1
        %s218 = smul.addr %s217, 8
        %s219 = scalar_lea.vmem %s3, %s218
        %v220 = vld [vmem:[%s211] sm:$0xff]
        %v221 = vld [vmem:[%s178] sm:$0xff]
        %v222 = vsub.f32 %v220, %v221
        %v223 = vadd.f32 %v222, 1e-06
        %v224 = vmul.f32 %v223, %v223
        %225 = vadd.xlane.f32.xlu0 %v224
        %v226 = vpop.xlane.xlu0 %225
        %v227 = vrsqrt.pop %v226
        %v228 = vmul.f32 %v226, %v227
        %vm229 = vcmp.eq.f32.partialorder %v226, inf
        %v230 = vsel %vm229, %v226, %v228
        %vm231 = vcmp.eq.f32.partialorder %v226, 0.0
        %v232 = vand.u32 %v226, 2147483648
        %v233 = vsel %vm231, %v232, %v230
        %v234 = vld [vmem:[%s215] sm:$0xff]
        %v235 = vsub.f32 2.0, %v233
        %v236 = vmax.f32 %v235, 0.0
        %v237 = vsub.f32 1.0, %v234
        %v238 = vmul.f32 %v233, %v233
        %v239 = vmul.f32 %v237, %v238
        %v240 = vmul.f32 %v236, %v236
        %v241 = vmul.f32 %v234, %v240
        %v242 = vadd.f32 %v239, %v241
        %vm243 = vcmask 7168
        %244 = vst.msk [vmem:[%s219] sm:$0xff] %vm243, %v242
        %p245 = scmp.lt.s32.totalorder %s17, 1
        %s246 = scalar_select %p245, %s17, 1
        %s247 = smul.addr %s246, 8
        %s248 = scalar_lea.vmem %s3, %s247
        // Predicated region
        $region37: #{contrastive_loss.1} parent=31 // pred_check
          %p249 = pneg %p113
        $region38: #{contrastive_loss.1} parent=31 // pred_check_branch
          %251 = sbr.rel (%p249) target = $region40
        $region39: #{contrastive_loss.1} parent=31 // pred_region
          _
        $region40: #{contrastive_loss.1} parent=31 // pred_fallthru
          _
      $region32: #{contrastive_loss.1} parent=5 // pred_fallthru
        _
      %p252 = scmp.le.s32.totalorder 2, %s12
      // Predicated region
      $region41: #{contrastive_loss.1} parent=5 // pred_check
        %p253 = pneg %p252
      $region42: #{contrastive_loss.1} parent=5 // pred_check_branch
        %255 = sbr.rel (%p253) target = $region44
      $region43: #{contrastive_loss.1} parent=5 // pred_region
        %s256 = ssub.s32 %s12, 2
        // Predicated region
        $region45: #{contrastive_loss.1} parent=43 // pred_check
          %p257 = pneg %p119
        $region46: #{contrastive_loss.1} parent=43 // pred_check_branch
          %259 = sbr.rel (%p257) target = $region48
        $region47: #{contrastive_loss.1} parent=43 // pred_region
          %p260 = scmp.lt.s32.totalorder %s18, 1
          %s261 = scalar_select %p260, %s18, 1
          %s262 = smul.addr %s261, 8
          %s263 = scalar_lea.vmem %s3, %s262
        $region48: #{contrastive_loss.1} parent=43 // pred_fallthru
          _
      $region44: #{contrastive_loss.1} parent=5 // pred_fallthru
        _
    $region6: #{contrastive_loss.1} parent=1 // loop_footer
      %s16 = sadd.s32 1, %s12
    $region7: #{contrastive_loss.1} parent=1 // loop_footer_branch
      %11 = sbr.rel target = $region3
    $region8: #{contrastive_loss.1} parent=1 // loop_exit
      _
    %264 = vsyncpa [#allocation3], 1
    %s265 = scalar_lea.sflag [#allocation3], 1
    %266 = vsyncpa %s265, 1

</llo_original>
